<compile_context>
chip_gen: v7x
topology: tpu7x:2x2x1
jax: 0.10.0
libtpu: 0.0.40
codegen_flags: <defaults>
</compile_context>

<pallas_src>
import jax
import jax.numpy as jnp
from jax import lax
from jax.experimental import pallas as pl
from jax.experimental.pallas import tpu as pltpu


def _round_up(x, m):
    return ((x + m - 1) // m) * m


def _vmem_budget_bytes():
    """~75% of per-core VMEM (v5e/v6e: 128 MiB, v7x: 64 MiB); safe fallback 48 MiB."""
    try:
        info = pltpu.get_tpu_info()
        cap = getattr(info, "vmem_capacity_bytes", None)
        if cap:
            return int(cap) * 3 // 4
    except Exception:
        pass
    return 48 * 1024 * 1024  # conservative: fits v7x's 64 MiB/TC


# ----------------------------------------------------------------------------
# Kernel A: embedding table resident in VMEM, gather = in-VMEM vector loads.
# ----------------------------------------------------------------------------
def _hash_fwd_resident_kernel(nodes_ref,   # SMEM scalar prefetch: (B_pad,) int32
                              emb_ref,     # (N_pad, E_pad) VMEM-resident table
                              w_ref,       # (E_pad, H_pad) resident weights
                              b_ref,       # (1, H_pad) f32 resident bias
                              o_ref,       # (TB, H_pad) f32 output tile
                              x_buf):      # VMEM scratch (TB, E_pad)
    i = pl.program_id(0)
    tb = x_buf.shape[0]
    base = pl.multiple_of(i * tb, 8)

    # In-VMEM row gather: dynamic source row (single-cycle-class vector loads),
    # static destination row.  Fully unrolled so dest sublane offsets are static
    # and the LLO scheduler can pipeline the SMEM-id-load -> VMEM-load chains.
    for r in range(tb):
        nid = nodes_ref[base + r]
        x_buf[pl.ds(r, 1), :] = emb_ref[pl.ds(nid, 1), :]

    # MXU matmul with f32 accumulation; f32 epilogue; lane-dense (TB, 128k) store.
    y = jnp.dot(x_buf[...], w_ref[...], preferred_element_type=jnp.float32)
    y = y + b_ref[...]
    o_ref[...] = jnp.tanh(y).astype(o_ref.dtype)


# ----------------------------------------------------------------------------
# Kernel B: table stays in HBM, cross-tile double-buffered per-row DMA gather.
# ----------------------------------------------------------------------------
def _hash_fwd_dma_kernel(nodes_ref,   # SMEM scalar prefetch: (B_pad,) int32
                         emb_hbm,     # (N_pad, E_pad), memory_space=pl.ANY (HBM)
                         w_ref,       # (E_pad, H_pad) resident weights
                         b_ref,       # (1, H_pad) f32 resident bias
                         o_ref,       # (TB, H_pad) f32 output tile
                         x_buf,       # VMEM scratch (2, TB, E_pad) double buffer
                         sem):        # DMA semaphores (2,), one per slot
    i = pl.program_id(0)
    nt = pl.num_programs(0)
    tb = x_buf.shape[1]

    def issue_tile(tile_idx, slot):
        base = pl.multiple_of(tile_idx * tb, 8)

        def body(r, carry):
            nid = nodes_ref[base + r]
            pltpu.make_async_copy(emb_hbm.at[nid], x_buf.at[slot, r],
                                  sem.at[slot]).start()
            return carry

        lax.fori_loop(0, tb, body, 0, unroll=8)

    # Prologue: prime slot 0 with tile 0's row gathers.
    @pl.when(i == 0)
    def _():
        issue_tile(0, 0)

    # Issue tile i+1 into the other slot *before* draining tile i (overlap the
    # descriptor-issue + HBM latency of the next tile with this tile's drain).
    @pl.when(i + 1 < nt)
    def _():
        issue_tile(i + 1, (i + 1) % 2)

    # One aggregate wait whose byte count (tb * E_pad * itemsize) equals the sum
    # of the tb row copies signalled on this slot's semaphore.
    slot = i % 2
    pltpu.make_async_copy(x_buf.at[slot], x_buf.at[slot], sem.at[slot]).wait()

    y = jnp.dot(x_buf[slot], w_ref[...], preferred_element_type=jnp.float32)
    y = y + b_ref[...]
    o_ref[...] = jnp.tanh(y).astype(o_ref.dtype)


# ----------------------------------------------------------------------------
# Wrappers
# ----------------------------------------------------------------------------
def _hash_forward_one_call(nodes_i32, emb_pad, w_pad, b_pad, hashcode_dim,
                           tile_batch, force_hbm_table=False):
    B = int(nodes_i32.shape[0])
    N_pad, E_pad = emb_pad.shape
    H_pad = w_pad.shape[1]
    eb = jnp.dtype(emb_pad.dtype).itemsize
    wb = jnp.dtype(w_pad.dtype).itemsize

    # Batch tile: sublane-aligned; prefer >=2 tiles when the batch allows so both
    # v7x TensorCores get work under dimension_semantics=("parallel",).
    TB = min(tile_batch, _round_up(B, 8))
    if B >= 16 and _round_up(B, TB) // TB < 2:
        TB = _round_up(-(-B // 2), 8)
    B_pad = _round_up(B, TB)
    if B_pad != B:
        # Padding rows gather node 0 (valid work); they are sliced away below.
        nodes_i32 = jnp.pad(nodes_i32, (0, B_pad - B))
    num_tiles = B_pad // TB

    # Decide whether the whole padded table fits the per-generation VMEM budget.
    # Residents with constant index maps are conservatively counted twice
    # (pipeline double-buffer); pl.Buffered(1) could halve that but is skipped
    # for lowering robustness -- the conservative count only errs toward the
    # (still correct) DMA fallback.
    budget = _vmem_budget_bytes()
    resident_bytes = (2 * N_pad * E_pad * eb        # table
                      + 2 * E_pad * H_pad * wb      # weights
                      + 2 * H_pad * 4               # bias
                      + 2 * TB * H_pad * 4          # output tile
                      + TB * E_pad * eb             # gather scratch
                      + (1 << 20))                  # headroom
    table_resident = (resident_bytes <= budget) and not force_hbm_table

    cost = pl.CostEstimate(
        flops=2 * B_pad * E_pad * H_pad,
        transcendentals=B_pad * H_pad,
        bytes_accessed=((N_pad if table_resident else B_pad) * E_pad * eb
                        + E_pad * H_pad * wb + H_pad * 4
                        + B_pad * H_pad * 4 + B_pad * 4),
    )

    if table_resident:
        out = pl.pallas_call(
            _hash_fwd_resident_kernel,
            out_shape=jax.ShapeDtypeStruct((B_pad, H_pad), jnp.float32),
            grid_spec=pltpu.PrefetchScalarGridSpec(
                num_scalar_prefetch=1,
                grid=(num_tiles,),
                in_specs=[
                    pl.BlockSpec((N_pad, E_pad), lambda i, nodes: (0, 0)),  # table resident
                    pl.BlockSpec((E_pad, H_pad), lambda i, nodes: (0, 0)),  # weights resident
                    pl.BlockSpec((1, H_pad), lambda i, nodes: (0, 0)),      # bias resident
                ],
                out_specs=pl.BlockSpec((TB, H_pad), lambda i, nodes: (i, 0)),
                scratch_shapes=[pltpu.VMEM((TB, E_pad), emb_pad.dtype)],
            ),
            compiler_params=pltpu.CompilerParams(
                dimension_semantics=("parallel",),  # independent batch tiles
                vmem_limit_bytes=int(budget),       # above the 32 MiB scoped default
            ),
            cost_estimate=cost,
        )(nodes_i32, emb_pad, w_pad, b_pad)
    else:
        out = pl.pallas_call(
            _hash_fwd_dma_kernel,
            out_shape=jax.ShapeDtypeStruct((B_pad, H_pad), jnp.float32),
            grid_spec=pltpu.PrefetchScalarGridSpec(
                num_scalar_prefetch=1,
                grid=(num_tiles,),
                in_specs=[
                    pl.BlockSpec(memory_space=pl.ANY),                       # table stays in HBM
                    pl.BlockSpec((E_pad, H_pad), lambda i, nodes: (0, 0)),   # weights resident
                    pl.BlockSpec((1, H_pad), lambda i, nodes: (0, 0)),       # bias resident
                ],
                out_specs=pl.BlockSpec((TB, H_pad), lambda i, nodes: (i, 0)),
                scratch_shapes=[
                    pltpu.VMEM((2, TB, E_pad), emb_pad.dtype),   # double-buffered gather tiles
                    pltpu.SemaphoreType.DMA((2,)),               # one semaphore per slot
                ],
            ),
            compiler_params=pltpu.CompilerParams(
                # The cross-tile DMA pipeline carries state across grid steps.
                dimension_semantics=("arbitrary",),
            ),
            cost_estimate=cost,
        )(nodes_i32, emb_pad, w_pad, b_pad)

    return out[:B, :hashcode_dim]


def hash_forward(nodes, emb_pad, w_pad, b_pad, hashcode_dim, *, tile_batch=256,
                 max_batch_per_call=65536, force_hbm_table=False):
    """tanh(Embedding(nodes) @ W^T + b) with the gather fused into the kernel."""
    nodes_i32 = jnp.asarray(nodes, jnp.int32).reshape(-1)
    # Clamp ids so bad/padded ids can never drive an out-of-bounds gather.
    nodes_i32 = jnp.clip(nodes_i32, 0, emb_pad.shape[0] - 1)
    # NOTE: deduping ids (jnp.unique) does not shrink the kernel's work under
    # static shapes, so it is left to callers operating outside jit.
    B = int(nodes_i32.shape[0])
    if B <= max_batch_per_call:
        return _hash_forward_one_call(nodes_i32, emb_pad, w_pad, b_pad,
                                      hashcode_dim, tile_batch, force_hbm_table)
    # Very large batches: chunk so the (B,) scalar-prefetch array stays in SMEM.
    outs = []
    for s in range(0, B, max_batch_per_call):
        outs.append(_hash_forward_one_call(
            nodes_i32[s:s + max_batch_per_call], emb_pad, w_pad, b_pad,
            hashcode_dim, tile_batch, force_hbm_table))
    return jnp.concatenate(outs, axis=0)


class HashCodeGeneratorPallas:
    """JAX/Pallas port of HashCodeGenerator (forward path only).

    Parameters are stored zero-padded to lane-aligned shapes (E_pad, H_pad are
    multiples of 128, N padded to a multiple of 8): embeddings (N_pad, E_pad),
    W^T (E_pad, H_pad), bias (1, H_pad).  Zero padding keeps the first
    HASHCODE_DIM output columns identical to the unpadded math; forward()
    slices the result back to (B, HASHCODE_DIM).  Set param_dtype=jnp.bfloat16
    to halve gather bytes / resident VMEM (outputs then differ ~1e-3).
    """

    def __init__(self, num_nodes, embedding_dim, hashcode_dim, key,
                 tile_batch=256, param_dtype=jnp.float32):
        self.num_nodes = num_nodes
        self.embedding_dim = embedding_dim
        self.hashcode_dim = hashcode_dim
        self.tile_batch = tile_batch
        self.param_dtype = param_dtype
        self._n_pad = _round_up(num_nodes, 8)
        self._e_pad = _round_up(embedding_dim, 128)
        self._h_pad = _round_up(hashcode_dim, 128)

        k1, k2, k3 = jax.random.split(key, 3)
        # nn.Embedding default init: N(0, 1)
        emb = jax.random.normal(k1, (num_nodes, embedding_dim), jnp.float32)
        # nn.init.normal_(hash_linear1.weight): N(0, 1); stored transposed (E, H)
        w_t = jax.random.normal(k2, (embedding_dim, hashcode_dim), jnp.float32)
        # nn.Linear default bias init: U(-1/sqrt(E), 1/sqrt(E))
        bound = 1.0 / (embedding_dim ** 0.5)
        b = jax.random.uniform(k3, (hashcode_dim,), jnp.float32, -bound, bound)

        self.emb_pad = jnp.zeros((self._n_pad, self._e_pad), param_dtype) \
            .at[:num_nodes, :embedding_dim].set(emb.astype(param_dtype))
        self.w_pad = jnp.zeros((self._e_pad, self._h_pad), param_dtype) \
            .at[:embedding_dim, :hashcode_dim].set(w_t.astype(param_dtype))
        self.b_pad = jnp.zeros((1, self._h_pad), jnp.float32) \
            .at[0, :hashcode_dim].set(b)
        # TODO(synk): non_nbr_mat bookkeeping and computeLoss (hinge ranking loss)
        # are not part of forward() and are omitted here.

    def init_embeddings(self, embeddings):
        """Analog of HashCodeGenerator.init_embeddings; expects an (N, E) array."""
        emb = jnp.asarray(embeddings, jnp.float32)
        self.emb_pad = jnp.zeros((self._n_pad, self._e_pad), self.param_dtype) \
            .at[:self.num_nodes, :self.embedding_dim].set(emb.astype(self.param_dtype))

    # Unpadded parameter views (handy for reference checks).
    @property
    def all_embeddings(self):
        return self.emb_pad[:self.num_nodes, :self.embedding_dim].astype(jnp.float32)

    @property
    def w_t(self):
        return self.w_pad[:self.embedding_dim, :self.hashcode_dim].astype(jnp.float32)

    @property
    def bias(self):
        return self.b_pad[0, :self.hashcode_dim]

    def forward(self, nodes):
        return hash_forward(nodes, self.emb_pad, self.w_pad, self.b_pad,
                            self.hashcode_dim, tile_batch=self.tile_batch)


if __name__ == "__main__":
    key = jax.random.PRNGKey(0)
    NUM_NODES, EMBEDDING_DIM, HASHCODE_DIM = 64, 32, 16
    model = HashCodeGeneratorPallas(NUM_NODES, EMBEDDING_DIM, HASHCODE_DIM, key)

    # 1) Small batch -> VMEM-resident table path, single tile.
    nodes = jnp.array([3, 7, 11, 0, 42, 63, 5, 19], dtype=jnp.int32)
    out = jax.block_until_ready(model.forward(nodes))
    ref = jnp.tanh(model.all_embeddings[nodes] @ model.w_t + model.bias)
    assert out.shape == (nodes.shape[0], HASHCODE_DIM)
    assert jnp.allclose(out, ref, atol=1e-5, rtol=1e-5)

    # 2) Larger, non-aligned batch -> resident path, multi-tile grid (>=2 tiles).
    nodes2 = jax.random.randint(jax.random.PRNGKey(1), (200,), 0, NUM_NODES,
                                dtype=jnp.int32)
    out2 = jax.block_until_ready(model.forward(nodes2))
    ref2 = jnp.tanh(model.all_embeddings[nodes2] @ model.w_t + model.bias)
    assert out2.shape == (200, HASHCODE_DIM)
    assert jnp.allclose(out2, ref2, atol=1e-5, rtol=1e-5)

    # 3) Force the HBM-DMA fallback (as if the table did not fit VMEM) to
    #    exercise the cross-tile double-buffered gather + aggregate wait.
    out3 = jax.block_until_ready(
        hash_forward(nodes2, model.emb_pad, model.w_pad, model.b_pad,
                     HASHCODE_DIM, tile_batch=64, force_hbm_table=True))
    assert out3.shape == (200, HASHCODE_DIM)
    assert jnp.allclose(out3, ref2, atol=1e-5, rtol=1e-5)

    print("KERNEL_OK")
</pallas_src>

<mosaic_0001>
module attributes {stable_mosaic.version = 11 : i64} {
  func.func @_hash_fwd_resident_kernel(%arg0: i32, %arg1: memref<8xi32, #tpu.memory_space<smem>>, %arg2: memref<64x128xf32, #tpu.memory_space<vmem>>, %arg3: memref<128x128xf32, #tpu.memory_space<vmem>>, %arg4: memref<1x128xf32, #tpu.memory_space<vmem>>, %arg5: memref<8x128xf32, #tpu.memory_space<vmem>>, %arg6: memref<8x128xf32, #tpu.memory_space<vmem>>) attributes {dimension_semantics = [#tpu.dimension_semantics<parallel>], iteration_bounds = array<i64: 1>, scalar_prefetch = 1 : i64, scratch_operands = 1 : i64, tpu.core_type = #tpu.core_type<tc>, window_params = [{pipeline_mode = #tpu.pipeline_mode<synchronous>, transform_indices = @transform_0, window_bounds = array<i64: 64, 128>}, {pipeline_mode = #tpu.pipeline_mode<synchronous>, transform_indices = @transform_1, window_bounds = array<i64: 128, 128>}, {pipeline_mode = #tpu.pipeline_mode<synchronous>, transform_indices = @transform_2, window_bounds = array<i64: 1, 128>}, {transform_indices = @transform_3, window_bounds = array<i64: 8, 128>}]} {
    %c8_i32 = arith.constant 8 : i32
    %0 = arith.muli %arg0, %c8_i32 : i32
    %1 = tpu.assume_multiple %0, 8 : i32
    %c0_i32 = arith.constant 0 : i32
    %2 = arith.addi %1, %c0_i32 : i32
    %3 = arith.index_cast %2 : i32 to index
    %4 = memref.load %arg1[%3] : memref<8xi32, #tpu.memory_space<smem>>
    %5 = arith.index_cast %4 : i32 to index
    %c0 = arith.constant 0 : index
    %6 = vector.load %arg2[%5, %c0] : memref<64x128xf32, #tpu.memory_space<vmem>>, vector<1x128xf32>
    %c0_0 = arith.constant 0 : index
    %c0_1 = arith.constant 0 : index
    %7 = vector.load %arg6[%c0_0, %c0_1] : memref<8x128xf32, #tpu.memory_space<vmem>>, vector<1x128xf32>
    tpu.vector_store %arg6[%c0_0, %c0_1], %6 {strides = array<i32>} : memref<8x128xf32, #tpu.memory_space<vmem>>, vector<1x128xf32>,
    %c1_i32 = arith.constant 1 : i32
    %8 = arith.addi %1, %c1_i32 : i32
    %9 = arith.index_cast %8 : i32 to index
    %10 = memref.load %arg1[%9] : memref<8xi32, #tpu.memory_space<smem>>
    %11 = arith.index_cast %10 : i32 to index
    %c0_2 = arith.constant 0 : index
    %12 = vector.load %arg2[%11, %c0_2] : memref<64x128xf32, #tpu.memory_space<vmem>>, vector<1x128xf32>
    %c1 = arith.constant 1 : index
    %c0_3 = arith.constant 0 : index
    %13 = vector.load %arg6[%c1, %c0_3] : memref<8x128xf32, #tpu.memory_space<vmem>>, vector<1x128xf32>
    tpu.vector_store %arg6[%c1, %c0_3], %12 {strides = array<i32>} : memref<8x128xf32, #tpu.memory_space<vmem>>, vector<1x128xf32>,
    %c2_i32 = arith.constant 2 : i32
    %14 = arith.addi %1, %c2_i32 : i32
    %15 = arith.index_cast %14 : i32 to index
    %16 = memref.load %arg1[%15] : memref<8xi32, #tpu.memory_space<smem>>
    %17 = arith.index_cast %16 : i32 to index
    %c0_4 = arith.constant 0 : index
    %18 = vector.load %arg2[%17, %c0_4] : memref<64x128xf32, #tpu.memory_space<vmem>>, vector<1x128xf32>
    %c2 = arith.constant 2 : index
    %c0_5 = arith.constant 0 : index
    %19 = vector.load %arg6[%c2, %c0_5] : memref<8x128xf32, #tpu.memory_space<vmem>>, vector<1x128xf32>
    tpu.vector_store %arg6[%c2, %c0_5], %18 {strides = array<i32>} : memref<8x128xf32, #tpu.memory_space<vmem>>, vector<1x128xf32>,
    %c3_i32 = arith.constant 3 : i32
    %20 = arith.addi %1, %c3_i32 : i32
    %21 = arith.index_cast %20 : i32 to index
    %22 = memref.load %arg1[%21] : memref<8xi32, #tpu.memory_space<smem>>
    %23 = arith.index_cast %22 : i32 to index
    %c0_6 = arith.constant 0 : index
    %24 = vector.load %arg2[%23, %c0_6] : memref<64x128xf32, #tpu.memory_space<vmem>>, vector<1x128xf32>
    %c3 = arith.constant 3 : index
    %c0_7 = arith.constant 0 : index
    %25 = vector.load %arg6[%c3, %c0_7] : memref<8x128xf32, #tpu.memory_space<vmem>>, vector<1x128xf32>
    tpu.vector_store %arg6[%c3, %c0_7], %24 {strides = array<i32>} : memref<8x128xf32, #tpu.memory_space<vmem>>, vector<1x128xf32>,
    %c4_i32 = arith.constant 4 : i32
    %26 = arith.addi %1, %c4_i32 : i32
    %27 = arith.index_cast %26 : i32 to index
    %28 = memref.load %arg1[%27] : memref<8xi32, #tpu.memory_space<smem>>
    %29 = arith.index_cast %28 : i32 to index
    %c0_8 = arith.constant 0 : index
    %30 = vector.load %arg2[%29, %c0_8] : memref<64x128xf32, #tpu.memory_space<vmem>>, vector<1x128xf32>
    %c4 = arith.constant 4 : index
    %c0_9 = arith.constant 0 : index
    %31 = vector.load %arg6[%c4, %c0_9] : memref<8x128xf32, #tpu.memory_space<vmem>>, vector<1x128xf32>
    tpu.vector_store %arg6[%c4, %c0_9], %30 {strides = array<i32>} : memref<8x128xf32, #tpu.memory_space<vmem>>, vector<1x128xf32>,
    %c5_i32 = arith.constant 5 : i32
    %32 = arith.addi %1, %c5_i32 : i32
    %33 = arith.index_cast %32 : i32 to index
    %34 = memref.load %arg1[%33] : memref<8xi32, #tpu.memory_space<smem>>
    %35 = arith.index_cast %34 : i32 to index
    %c0_10 = arith.constant 0 : index
    %36 = vector.load %arg2[%35, %c0_10] : memref<64x128xf32, #tpu.memory_space<vmem>>, vector<1x128xf32>
    %c5 = arith.constant 5 : index
    %c0_11 = arith.constant 0 : index
    %37 = vector.load %arg6[%c5, %c0_11] : memref<8x128xf32, #tpu.memory_space<vmem>>, vector<1x128xf32>
    tpu.vector_store %arg6[%c5, %c0_11], %36 {strides = array<i32>} : memref<8x128xf32, #tpu.memory_space<vmem>>, vector<1x128xf32>,
    %c6_i32 = arith.constant 6 : i32
    %38 = arith.addi %1, %c6_i32 : i32
    %39 = arith.index_cast %38 : i32 to index
    %40 = memref.load %arg1[%39] : memref<8xi32, #tpu.memory_space<smem>>
    %41 = arith.index_cast %40 : i32 to index
    %c0_12 = arith.constant 0 : index
    %42 = vector.load %arg2[%41, %c0_12] : memref<64x128xf32, #tpu.memory_space<vmem>>, vector<1x128xf32>
    %c6 = arith.constant 6 : index
    %c0_13 = arith.constant 0 : index
    %43 = vector.load %arg6[%c6, %c0_13] : memref<8x128xf32, #tpu.memory_space<vmem>>, vector<1x128xf32>
    tpu.vector_store %arg6[%c6, %c0_13], %42 {strides = array<i32>} : memref<8x128xf32, #tpu.memory_space<vmem>>, vector<1x128xf32>,
    %c7_i32 = arith.constant 7 : i32
    %44 = arith.addi %1, %c7_i32 : i32
    %45 = arith.index_cast %44 : i32 to index
    %46 = memref.load %arg1[%45] : memref<8xi32, #tpu.memory_space<smem>>
    %47 = arith.index_cast %46 : i32 to index
    %c0_14 = arith.constant 0 : index
    %48 = vector.load %arg2[%47, %c0_14] : memref<64x128xf32, #tpu.memory_space<vmem>>, vector<1x128xf32>
    %c7 = arith.constant 7 : index
    %c0_15 = arith.constant 0 : index
    %49 = vector.load %arg6[%c7, %c0_15] : memref<8x128xf32, #tpu.memory_space<vmem>>, vector<1x128xf32>
    tpu.vector_store %arg6[%c7, %c0_15], %48 {strides = array<i32>} : memref<8x128xf32, #tpu.memory_space<vmem>>, vector<1x128xf32>,
    %c0_16 = arith.constant 0 : index
    %c0_17 = arith.constant 0 : index
    %50 = vector.load %arg6[%c0_16, %c0_17] : memref<8x128xf32, #tpu.memory_space<vmem>>, vector<8x128xf32>
    %c0_18 = arith.constant 0 : index
    %c0_19 = arith.constant 0 : index
    %51 = vector.load %arg3[%c0_18, %c0_19] : memref<128x128xf32, #tpu.memory_space<vmem>>, vector<128x128xf32>
    %cst = arith.constant dense<0.000000e+00> : vector<8x128xf32>
    %52 = tpu.matmul %50, %51, %cst {dimension_numbers = #tpu.dot_dimension_numbers<[1], [0], [0], [1], [0, 0, 1, 1], [], []>} : vector<8x128xf32>, vector<128x128xf32>, vector<8x128xf32> -> vector<8x128xf32>
    %c0_20 = arith.constant 0 : index
    %c0_21 = arith.constant 0 : index
    %53 = vector.load %arg4[%c0_20, %c0_21] : memref<1x128xf32, #tpu.memory_space<vmem>>, vector<1x128xf32>
    %54 = vector.broadcast %53 : vector<1x128xf32> to vector<8x128xf32>
    %55 = arith.addf %52, %54 : vector<8x128xf32>
    %56 = math.tanh %55 : vector<8x128xf32>
    %c0_22 = arith.constant 0 : index
    %c0_23 = arith.constant 0 : index
    %57 = vector.load %arg5[%c0_22, %c0_23] : memref<8x128xf32, #tpu.memory_space<vmem>>, vector<8x128xf32>
    tpu.vector_store %arg5[%c0_22, %c0_23], %56 {strides = array<i32>} : memref<8x128xf32, #tpu.memory_space<vmem>>, vector<8x128xf32>,
    return
  }
  func.func @transform_0(%arg0: i32, %arg1: memref<8xi32, #tpu.memory_space<smem>>) -> (i32, i32) {
    %c0_i32 = arith.constant 0 : i32
    %c0_i32_0 = arith.constant 0 : i32
    %c0_i32_1 = arith.constant 0 : i32
    return %c0_i32, %c0_i32_0 : i32, i32
  }
  func.func @transform_1(%arg0: i32, %arg1: memref<8xi32, #tpu.memory_space<smem>>) -> (i32, i32) {
    %c0_i32 = arith.constant 0 : i32
    %c0_i32_0 = arith.constant 0 : i32
    %c0_i32_1 = arith.constant 0 : i32
    return %c0_i32, %c0_i32_0 : i32, i32
  }
  func.func @transform_2(%arg0: i32, %arg1: memref<8xi32, #tpu.memory_space<smem>>) -> (i32, i32) {
    %c0_i32 = arith.constant 0 : i32
    %c0_i32_0 = arith.constant 0 : i32
    %c0_i32_1 = arith.constant 0 : i32
    return %c0_i32, %c0_i32_0 : i32, i32
  }
  func.func @transform_3(%arg0: i32, %arg1: memref<8xi32, #tpu.memory_space<smem>>) -> (i32, i32) {
    %c0_i32 = arith.constant 0 : i32
    %c0_i32_0 = arith.constant 0 : i32
    return %arg0, %c0_i32 : i32, i32
  }
}

</mosaic_0001>

<llo_original>
// kernel: tpu_custom_call.1
$region0: #{tpu_custom_call.1}
  #allocation0 [shape = 'u32[]', space=smem, size = 0x4, offset = 0x4, fixed_abs, tag = 'smem constant byte address 0x4 - core index']
  #allocation1 [shape = 'u32[144,128]{1,0:T(1,128)}', space=vmem, size = 0x12000, scoped, tag = 'internal scratch']
  #allocation2 [shape = 'f32[8,128]{1,0:T(8,128)}', space=vmem, size = 0x1000, scoped, tag = 'scratch operand']
  #allocation3 [shape = 's32[1]{0}', space=sflag, size = 0x4, scoped, tag = 'scoped memory for tpu_custom_call.1']
  #allocation4 [shape = 'u8[512]{0}', space=smem, size = 0x200, scoped, tag = 'prefetched SMEM operand 0']
  %s0 = inlined_call_operand.hbm [shape: s32[8], index: 0, kind: input, shape index: {}]
  %s1 = inlined_call_operand.hbm [shape: f32[64,128], index: 1, kind: input, shape index: {}]
  %s2 = inlined_call_operand.hbm [shape: f32[128,128], index: 2, kind: input, shape index: {}]
  %s3 = inlined_call_operand.vmem [shape: f32[1,128], index: 3, kind: input, shape index: {}]
  %s4 = inlined_call_operand.hbm [shape: f32[8,128], index: 4, kind: output, shape index: {}]
  %s5 = sld [smem:[#allocation0]]
  $region30: #{tpu_custom_call.1} parent=0
    _
  %s7 = ssub.s32 1, %s5
  %s8 = scalar_select 0, %s7, %s5
  %10 = dma.hbm_to_smem %s0, 16, [#allocation4], [#allocation3]
  %11 = dma.done [#allocation3], 16
  %12 = sfence
  $region1: #{tpu_custom_call.1} parent=0
    #allocation5 [shape = 'u8[32768]{0}', space=vmem, size = 0x8000, scoped, tag = 'input window, operand 1, single buffered']
    #allocation6 [shape = 's32[1]{0}', space=sflag, size = 0x4, scoped, tag = 'scoped memory for tpu_custom_call.1']
    #allocation7 [shape = 's32[1]{0}', space=sflag, size = 0x4, scoped, tag = 'scoped memory for tpu_custom_call.1']
    #allocation8 [shape = 'u8[65536]{0}', space=vmem, size = 0x10000, scoped, tag = 'input window, operand 2, single buffered']
    #allocation9 [shape = 's32[1]{0}', space=sflag, size = 0x4, scoped, tag = 'scoped memory for tpu_custom_call.1']
    #allocation10 [shape = 'u8[4096]{0}', space=vmem, size = 0x1000, scoped, tag = 'output window, operand 0, single buffered']
    %13 = vsyncpa [#allocation6], 0
    %14 = vsyncpa [#allocation9], 0
    %15 = vsyncpa [#allocation7], 0
    // Predicated region
    $region2: #{tpu_custom_call.1} parent=1 // pred_check
      _
    $region3: #{tpu_custom_call.1} parent=1 // pred_check_branch
      %17 = sbr.rel (0) target = $region5
    $region4: #{tpu_custom_call.1} parent=1 // pred_region
      %s19 = ssub.s32 1024, 1024
      %20 = vsyncadd [#allocation6], %s19
      %s21 = sshll.u32 [#allocation5], 4
      %s22 = int_to_ptr.vmem [resolvable:$true] %s21
      %27 = dma.hbm_to_vmem [thread:$0]  %s1, 1024, %s22, [#allocation6], 128, 128, 8
    $region5: #{tpu_custom_call.1} parent=1 // pred_fallthru
      _
    // Predicated region
    $region6: #{tpu_custom_call.1} parent=1 // pred_check
      _
    $region7: #{tpu_custom_call.1} parent=1 // pred_check_branch
      %29 = sbr.rel (0) target = $region9
    $region8: #{tpu_custom_call.1} parent=1 // pred_region
      %s31 = ssub.s32 2048, 2048
      %32 = vsyncadd [#allocation9], %s31
      %s33 = sshll.u32 [#allocation8], 4
      %s34 = int_to_ptr.vmem [resolvable:$true] %s33
      %39 = dma.hbm_to_vmem [thread:$0]  %s2, 2048, %s34, [#allocation9], 128, 128, 8
    $region9: #{tpu_custom_call.1} parent=1 // pred_fallthru
      _
    // Predicated region
    $region10: #{tpu_custom_call.1} parent=1 // pred_check
      _
    $region11: #{tpu_custom_call.1} parent=1 // pred_check_branch
      %41 = sbr.rel (0) target = $region13
    $region12: #{tpu_custom_call.1} parent=1 // pred_region
      _
    $region13: #{tpu_custom_call.1} parent=1 // pred_fallthru
      _
    // Predicated region
    $region14: #{tpu_custom_call.1} parent=1 // pred_check
      _
    $region15: #{tpu_custom_call.1} parent=1 // pred_check_branch
      %43 = sbr.rel (0) target = $region17
    $region16: #{tpu_custom_call.1} parent=1 // pred_region
      %44 = dma.done [#allocation6], 1024
    $region17: #{tpu_custom_call.1} parent=1 // pred_fallthru
      _
    // Predicated region
    $region18: #{tpu_custom_call.1} parent=1 // pred_check
      _
    $region19: #{tpu_custom_call.1} parent=1 // pred_check_branch
      %46 = sbr.rel (0) target = $region21
    $region20: #{tpu_custom_call.1} parent=1 // pred_region
      %47 = dma.done [#allocation9], 2048
    $region21: #{tpu_custom_call.1} parent=1 // pred_fallthru
      _
    %s48 = smul.u32 0, 8
    %s49 = sld [smem:[#allocation4 + %s48]]
    %s50 = scalar_lea.vmem [#allocation5], %s49
    %v51 = vld [vmem:[%s50] sm:$0x1]
    %52 = vst [vmem:[#allocation2] sm:$0x1] %v51
    %s53 = sadd.s32 %s48, 1
    %s54 = sld [smem:[#allocation4 + %s53]]
    %s55 = scalar_lea.vmem [#allocation5], %s54
    %v56 = vld [vmem:[%s55] sm:$0x1]
    %57 = vst [vmem:[#allocation2 + $0x1] sm:$0x1] %v56
    %s58 = sadd.s32 %s48, 2
    %s59 = sld [smem:[#allocation4 + %s58]]
    %s60 = scalar_lea.vmem [#allocation5], %s59
    %v61 = vld [vmem:[%s60] sm:$0x1]
    %62 = vst [vmem:[#allocation2 + $0x2] sm:$0x1] %v61
    %s63 = sadd.s32 %s48, 3
    %s64 = sld [smem:[#allocation4 + %s63]]
    %s65 = scalar_lea.vmem [#allocation5], %s64
    %v66 = vld [vmem:[%s65] sm:$0x1]
    %67 = vst [vmem:[#allocation2 + $0x3] sm:$0x1] %v66
    %s68 = sadd.s32 %s48, 4
    %s69 = sld [smem:[#allocation4 + %s68]]
    %s70 = scalar_lea.vmem [#allocation5], %s69
    %v71 = vld [vmem:[%s70] sm:$0x1]
    %72 = vst [vmem:[#allocation2 + $0x4] sm:$0x1] %v71
    %s73 = sadd.s32 %s48, 5
    %s74 = sld [smem:[#allocation4 + %s73]]
    %s75 = scalar_lea.vmem [#allocation5], %s74
    %v76 = vld [vmem:[%s75] sm:$0x1]
    %77 = vst [vmem:[#allocation2 + $0x5] sm:$0x1] %v76
    %s78 = sadd.s32 %s48, 6
    %s79 = sld [smem:[#allocation4 + %s78]]
    %s80 = scalar_lea.vmem [#allocation5], %s79
    %v81 = vld [vmem:[%s80] sm:$0x1]
    %82 = vst [vmem:[#allocation2 + $0x6] sm:$0x1] %v81
    %s83 = sadd.s32 %s48, 7
    %s84 = sld [smem:[#allocation4 + %s83]]
    %s85 = scalar_lea.vmem [#allocation5], %s84
    %v86 = vld [vmem:[%s85] sm:$0x1]
    %87 = vst [vmem:[#allocation2 + $0x7] sm:$0x1] %v86
    %v88 = vld [vmem:[#allocation2] sm:$0xff]
    %v89 = vld [vmem:[#allocation8] sm:$0xff]
    %v90 = vld [vmem:[#allocation8 + $0x8] sm:$0xff]
    %v91 = vld [vmem:[#allocation8 + $0x10] sm:$0xff]
    %v92 = vld [vmem:[#allocation8 + $0x18] sm:$0xff]
    %v93 = vld [vmem:[#allocation8 + $0x20] sm:$0xff]
    %v94 = vld [vmem:[#allocation8 + $0x28] sm:$0xff]
    %v95 = vld [vmem:[#allocation8 + $0x30] sm:$0xff]
    %v96 = vld [vmem:[#allocation8 + $0x38] sm:$0xff]
    %v97 = vld [vmem:[#allocation8 + $0x40] sm:$0xff]
    %v98 = vld [vmem:[#allocation8 + $0x48] sm:$0xff]
    %v99 = vld [vmem:[#allocation8 + $0x50] sm:$0xff]
    %v100 = vld [vmem:[#allocation8 + $0x58] sm:$0xff]
    %v101 = vld [vmem:[#allocation8 + $0x60] sm:$0xff]
    %v102 = vld [vmem:[#allocation8 + $0x68] sm:$0xff]
    %v103 = vld [vmem:[#allocation8 + $0x70] sm:$0xff]
    %v104 = vld [vmem:[#allocation8 + $0x78] sm:$0xff]
    %v105 = vld [vmem:[%s3] sm:$0x1]
    %v107 = vlaneseq
    %v108 = vshrl.u32 %v107, 7
    %v109 = vsub.s32 0, %v108
    %v110 = vrot.slane %v105, %v109
    %112 = vmatprep.subr.mxu0 0.0
    %113 = vmatpush1.msra.mxu0 %v89
    %114 = vmatprep.subr.mxu0 0.0
    %115 = vmatpush1.msra.mxu0 %v90
    %116 = vmatprep.subr.mxu0 0.0
    %117 = vmatpush1.msra.mxu0 %v91
    %118 = vmatprep.subr.mxu0 0.0
    %119 = vmatpush1.msra.mxu0 %v92
    %120 = vmatprep.subr.mxu0 0.0
    %121 = vmatpush1.msra.mxu0 %v93
    %122 = vmatprep.subr.mxu0 0.0
    %123 = vmatpush1.msra.mxu0 %v94
    %124 = vmatprep.subr.mxu0 0.0
    %125 = vmatpush1.msra.mxu0 %v95
    %126 = vmatprep.subr.mxu0 0.0
    %127 = vmatpush1.msra.mxu0 %v96
    %128 = vmatprep.subr.mxu0 0.0
    %129 = vmatpush1.msra.mxu0 %v97
    %130 = vmatprep.subr.mxu0 0.0
    %131 = vmatpush1.msra.mxu0 %v98
    %132 = vmatprep.subr.mxu0 0.0
    %133 = vmatpush1.msra.mxu0 %v99
    %134 = vmatprep.subr.mxu0 0.0
    %135 = vmatpush1.msra.mxu0 %v100
    %136 = vmatprep.subr.mxu0 0.0
    %137 = vmatpush1.msra.mxu0 %v101
    %138 = vmatprep.subr.mxu0 0.0
    %139 = vmatpush1.msra.mxu0 %v102
    %140 = vmatprep.subr.mxu0 0.0
    %141 = vmatpush1.msra.mxu0 %v103
    %142 = vmatprep.subr.mxu0 0.0
    %143 = vmatpush1.msra.mxu0 %v104
    %144 = vmatprep.subr.mxu0 0.0
    %145 = vmatpush1.msra.mxu0 0.0
    %146 = vmatprep.subr.mxu0 0.0
    %147 = vmatpush1.msra.mxu0 0.0
    %148 = vmatprep.subr.mxu0 0.0
    %149 = vmatpush1.msra.mxu0 0.0
    %150 = vmatprep.subr.mxu0 0.0
    %151 = vmatpush1.msra.mxu0 0.0
    %152 = vmatprep.subr.mxu0 0.0
    %153 = vmatpush1.msra.mxu0 0.0
    %154 = vmatprep.subr.mxu0 0.0
    %155 = vmatpush1.msra.mxu0 0.0
    %156 = vmatprep.subr.mxu0 0.0
    %157 = vmatpush1.msra.mxu0 0.0
    %158 = vmatprep.subr.mxu0 0.0
    %159 = vmatpush1.msra.mxu0 0.0
    %160 = vmatprep.subr.mxu0 0.0
    %161 = vmatpush1.msra.mxu0 0.0
    %162 = vmatprep.subr.mxu0 0.0
    %163 = vmatpush1.msra.mxu0 0.0
    %164 = vmatprep.subr.mxu0 0.0
    %165 = vmatpush1.msra.mxu0 0.0
    %166 = vmatprep.subr.mxu0 0.0
    %167 = vmatpush1.msra.mxu0 0.0
    %168 = vmatprep.subr.mxu0 0.0
    %169 = vmatpush1.msra.mxu0 0.0
    %170 = vmatprep.subr.mxu0 0.0
    %171 = vmatpush1.msra.mxu0 0.0
    %172 = vmatprep.subr.mxu0 0.0
    %173 = vmatpush1.msra.mxu0 0.0
    %174 = vmatprep.subr.mxu0 0.0
    %175 = vmatpush1.msra.mxu0 0.0
    %176 = vmatprep.mubr.f32.mxu0 0.0
    %177 = vmatmul.mubr.f32.gmra.mrb[0].mxu0 %v88
    %v178 = vpop.f32.mrb[0].mxu0
    %v179 = vadd.f32 %v110, %v178
    %v180 = vpop.f32.mrb[0].mxu0
    %181 = vdwg.mxu0
    %v182 = vtanh.pop %v179
    %183 = vst [vmem:[#allocation10] sm:$0xff] %v182
    // Predicated region
    $region22: #{tpu_custom_call.1} parent=1 // pred_check
      _
    $region23: #{tpu_custom_call.1} parent=1 // pred_check_branch
      %185 = sbr.rel (0) target = $region25
    $region24: #{tpu_custom_call.1} parent=1 // pred_region
      %s187 = ssub.s32 128, 128
      %188 = vsyncadd [#allocation7], %s187
      %s190 = sshll.u32 [#allocation10], 4
      %s191 = int_to_ptr.vmem [resolvable:$true] %s190
      %193 = dma.vmem_to_hbm [thread:$0]  %s191, 128, %s4, [#allocation7]
    $region25: #{tpu_custom_call.1} parent=1 // pred_fallthru
      _
    // Predicated region
    $region26: #{tpu_custom_call.1} parent=1 // pred_check
      _
    $region27: #{tpu_custom_call.1} parent=1 // pred_check_branch
      %195 = sbr.rel (0) target = $region29
    $region28: #{tpu_custom_call.1} parent=1 // pred_region
      %196 = dma.done [#allocation7], 128
    $region29: #{tpu_custom_call.1} parent=1 // pred_fallthru
      _
    %197 = vsyncpa [#allocation6], 1
    %198 = vsyncpa [#allocation9], 1
    %199 = vsyncpa [#allocation7], 1

</llo_original>
